<compile_context>
chip_gen: v7x
topology: tpu7x:2x2x1
jax: 0.10.0
libtpu: 0.0.40
codegen_flags: <defaults>
</compile_context>

<pallas_src>
import functools

import jax
import jax.numpy as jnp
from jax import lax
from jax.experimental import pallas as pl
from jax.experimental.pallas import tpu as pltpu

_MXU_DTYPE = jnp.bfloat16  # MXU operand dtype; accumulation is always f32.


# ---------------------------------------------------------------------------
# Sizing helpers
# ---------------------------------------------------------------------------

def _round_up(n, m):
    return ((n + m - 1) // m) * m


def _vmem_budget_bytes():
    """~80% of the physical per-core VMEM (128 MiB v5e/v6e, 64 MiB v7x)."""
    cap = 64 << 20  # conservative fallback (v7x per-TensorCore VMEM)
    try:
        info = pltpu.get_tpu_info()
        cap = int(getattr(info, "vmem_capacity_bytes", cap) or cap)
    except Exception:
        pass
    return int(0.8 * cap)


def _resblock_tiles(M_pad, H_pad, x_bytes, o_bytes, budget):
    """Pick (tm rows, tk contraction tile) for the fused ResBlock stack."""
    tm_cands = [c for c in (512, 256, 128) if M_pad % c == 0] or [128]
    tk_cands = []
    for c in (H_pad, 4096, 2048, 1024, 512, 256, 128):
        if c <= H_pad and H_pad % c == 0 and c not in tk_cands:
            tk_cands.append(c)

    def need(tm, tk):
        return (2 * tm * H_pad * x_bytes      # x rows (double-buffered)
                + 2 * H_pad * tk * 2          # bf16 weight slab (double-buffered)
                + 2 * tm * H_pad * o_bytes    # output tile (double-buffered)
                + 2 * tm * H_pad * 4          # h + acc f32 scratch
                + 2 * tm * H_pad * 4          # in-kernel f32 temporaries
                + (2 << 20))                  # headroom

    for tm in tm_cands:
        for tk in tk_cands:
            if need(tm, tk) <= budget:
                return tm, tk
    return tm_cands[-1], tk_cands[-1]


def _lm_tiles(M_pad, H_pad, V, o_bytes, budget):
    """Pick (tm rows, tn vocab tile) for the lm_head matmul."""
    tm_cands = [c for c in (256, 128) if M_pad % c == 0] or [128]
    tn_cap = max(128, _round_up(V, 128))
    tn_cands = [c for c in (1024, 512, 256, 128) if c <= tn_cap] or [128]
    for tm in tm_cands:
        for tn in tn_cands:
            need = (2 * tm * H_pad * 2        # bf16 activation rows (streamed)
                    + 2 * tn * H_pad * 2      # bf16 weight tile (row-resident)
                    + 2 * tm * tn * o_bytes   # output tile
                    + 2 * tm * tn * 4         # f32 accumulator temporary
                    + (2 << 20))
            if need <= budget:
                return tm, tn
    return 128, 128


# ---------------------------------------------------------------------------
# Fused ResBlock stack kernel:  for l in layers: h <- h + SiLU(h @ W_l^T + b_l)
# Grid: (head, row_tile, layer, k_tile); h lives in an f32 VMEM scratch.
# ---------------------------------------------------------------------------

def _resblock_stack_kernel(x_ref, w_ref, b_ref, o_ref, h_ref, acc_ref, *,
                           tk, nk_static):
    l = pl.program_id(2)
    k = pl.program_id(3)
    last_l = pl.num_programs(2) - 1
    last_k = pl.num_programs(3) - 1

    @pl.when((l == 0) & (k == 0))
    def _():                                     # load the row tile once per (head, i)
        h_ref[...] = x_ref[...].astype(jnp.float32)

    @pl.when(k == 0)
    def _():                                     # fresh accumulator per layer
        acc_ref[...] = jnp.zeros_like(acc_ref)

    # MXU: contract the tk slice of h against the (H_out, tk) bf16 weight slab.
    if nk_static == 1:
        lhs = h_ref[...]
    else:
        off = pl.multiple_of(k * tk, tk)
        lhs = h_ref[:, pl.ds(off, tk)]
    acc_ref[...] += lax.dot_general(lhs.astype(_MXU_DTYPE), w_ref[0, 0],
                                    (((1,), (1,)), ((), ())),
                                    preferred_element_type=jnp.float32)

    @pl.when(k == last_k)
    def _():                                     # layer epilogue: bias + SiLU + residual (f32)
        a = acc_ref[...] + b_ref[0, 0].astype(jnp.float32)
        h_ref[...] = h_ref[...] + a * jax.nn.sigmoid(a)

    @pl.when((k == last_k) & (l == last_l))
    def _():                                     # write final hidden state once
        o_ref[0] = h_ref[...].astype(o_ref.dtype)


def resblock_stack(x, w, b):
    """x: [M, H]; w: [nH, L, H, H] (PyTorch out,in layout); b: [nH, L, H].

    Returns (hidden_padded [nH, M_pad, H_pad] in x.dtype, (M_pad, H_pad)).
    """
    M, H = x.shape
    nH, L = w.shape[0], w.shape[1]
    M_pad = _round_up(max(M, 128), 128)          # decode-shape guard
    H_pad = _round_up(H, 128)

    budget = _vmem_budget_bytes()
    x_bytes = jnp.dtype(x.dtype).itemsize
    tm, tk = _resblock_tiles(M_pad, H_pad, x_bytes, x_bytes, budget)
    nk = H_pad // tk

    x_p = jnp.pad(x, ((0, M_pad - M), (0, H_pad - H)))
    w_p = jnp.pad(w, ((0, 0), (0, 0), (0, H_pad - H), (0, H_pad - H))).astype(_MXU_DTYPE)
    b_p = jnp.pad(b, ((0, 0), (0, 0), (0, H_pad - H))).reshape(nH, L, 1, H_pad)

    cost = pl.CostEstimate(
        flops=int(2 * nH * L * M_pad * H_pad * H_pad + 4 * nH * L * M_pad * H_pad),
        transcendentals=int(nH * L * M_pad * H_pad),
        bytes_accessed=int(
            nH * M_pad * H_pad * x_bytes                       # x rows (per head)
            + (M_pad // tm) * nH * L * H_pad * H_pad * 2       # weights re-streamed per row tile
            + nH * L * H_pad * 4                               # biases
            + nH * M_pad * H_pad * x_bytes),                   # hidden write-out
    )

    return pl.pallas_call(
        functools.partial(_resblock_stack_kernel, tk=tk, nk_static=nk),
        out_shape=jax.ShapeDtypeStruct((nH, M_pad, H_pad), x.dtype),
        grid_spec=pltpu.PrefetchScalarGridSpec(
            num_scalar_prefetch=0,
            grid=(nH, M_pad // tm, L, nk),
            in_specs=[
                pl.BlockSpec((tm, H_pad), lambda h, i, l, k: (i, 0)),           # x rows (resident)
                pl.BlockSpec((1, 1, H_pad, tk), lambda h, i, l, k: (h, l, 0, k)),  # weight slab
                pl.BlockSpec((1, 1, 1, H_pad), lambda h, i, l, k: (h, l, 0, 0)),   # bias
            ],
            out_specs=pl.BlockSpec((1, tm, H_pad), lambda h, i, l, k: (h, i, 0)),
            scratch_shapes=[pltpu.VMEM((tm, H_pad), jnp.float32),   # running hidden state
                            pltpu.VMEM((tm, H_pad), jnp.float32)],  # per-layer matmul accumulator
        ),
        compiler_params=pltpu.CompilerParams(
            dimension_semantics=("parallel", "parallel", "arbitrary", "arbitrary"),
            vmem_limit_bytes=budget,
        ),
        cost_estimate=cost,
    )(x_p, w_p, b_p), (M_pad, H_pad)


# ---------------------------------------------------------------------------
# lm_head kernel:  logits = h @ W_lm^T + b_lm   (weight-resident across rows)
# ---------------------------------------------------------------------------

def _lm_head_kernel(x_ref, w_ref, b_ref, o_ref):
    acc = lax.dot_general(x_ref[0], w_ref[0], (((1,), (1,)), ((), ())),
                          preferred_element_type=jnp.float32)
    o_ref[0] = (acc + b_ref[0].astype(jnp.float32)).astype(o_ref.dtype)


def lm_heads(hidden_p, w, b, out_dtype, M, M_pad, H, H_pad):
    """hidden_p: [nH, M_pad, H_pad]; w: [nH, V, H]; b: [nH, V] -> [nH, M, V]."""
    nH, V, _ = w.shape
    budget = _vmem_budget_bytes()
    o_bytes = jnp.dtype(out_dtype).itemsize
    tm, tn = _lm_tiles(M_pad, H_pad, V, o_bytes, budget)
    V_pad = _round_up(V, tn)

    x_p = hidden_p.astype(_MXU_DTYPE)            # one-time bf16 cast of activations
    w_p = jnp.pad(w, ((0, 0), (0, V_pad - V), (0, H_pad - H))).astype(_MXU_DTYPE)
    b_p = jnp.pad(b, ((0, 0), (0, V_pad - V))).reshape(nH, 1, V_pad)

    cost = pl.CostEstimate(
        flops=int(2 * nH * M_pad * H_pad * V_pad),
        transcendentals=0,
        bytes_accessed=int(
            nH * V_pad * H_pad * 2                             # weights read once
            + (V_pad // tn) * nH * M_pad * H_pad * 2           # activations re-streamed per vocab tile
            + nH * V_pad * 4
            + nH * M_pad * V_pad * o_bytes),
    )

    out = pl.pallas_call(
        _lm_head_kernel,
        out_shape=jax.ShapeDtypeStruct((nH, M_pad, V_pad), out_dtype),
        grid_spec=pltpu.PrefetchScalarGridSpec(
            num_scalar_prefetch=0,
            grid=(nH, V_pad // tn, M_pad // tm),   # rows innermost -> weight tile resident
            in_specs=[
                pl.BlockSpec((1, tm, H_pad), lambda h, j, i: (h, i, 0)),   # activation rows (streamed)
                pl.BlockSpec((1, tn, H_pad), lambda h, j, i: (h, j, 0)),   # lm_head weight tile
                pl.BlockSpec((1, 1, tn), lambda h, j, i: (h, 0, j)),       # bias slice
            ],
            out_specs=pl.BlockSpec((1, tm, tn), lambda h, j, i: (h, i, j)),
        ),
        compiler_params=pltpu.CompilerParams(
            dimension_semantics=("parallel", "parallel", "arbitrary"),
            vmem_limit_bytes=budget,
        ),
        cost_estimate=cost,
    )(x_p, w_p, b_p)
    return out[:, :M, :V]


# ---------------------------------------------------------------------------
# HydraMLP forward (ungrounded heads)
# ---------------------------------------------------------------------------

def hydra_mlp_forward(base_hidden_states, mlp_weights, mlp_biases,
                      lm_weights, lm_biases):
    """HydraMLP.forward with grounded_heads=False.

    base_hidden_states: [B, S, H]
    mlp_weights / mlp_biases: per-head lists of per-layer [H, H] / [H]
    lm_weights / lm_biases:   per-head [V, H] / [V]
    Returns (hydra_logits, hydra_hidden_states), matching the PyTorch module.
    """
    B, S, H = base_hidden_states.shape
    M = B * S
    x2d = base_hidden_states.reshape(M, H)

    w_mlp = jnp.stack([jnp.stack(list(ws)) for ws in mlp_weights])   # [nH, L, H, H]
    b_mlp = jnp.stack([jnp.stack(list(bs)) for bs in mlp_biases])    # [nH, L, H]
    w_lm = jnp.stack(list(lm_weights))                               # [nH, V, H]
    b_lm = jnp.stack(list(lm_biases))                                # [nH, V]
    nH, V = w_lm.shape[0], w_lm.shape[1]

    hidden_p, (M_pad, H_pad) = resblock_stack(x2d, w_mlp, b_mlp)     # [nH, M_pad, H_pad]
    logits = lm_heads(hidden_p, w_lm, b_lm, base_hidden_states.dtype,
                      M, M_pad, H, H_pad)                            # [nH, M, V]

    hydra_hidden = [hidden_p[i, :M, :H].reshape(B, S, H) for i in range(nH)]
    hydra_logits = [logits[i].reshape(B, S, V) for i in range(nH)]
    return hydra_logits, hydra_hidden


# ---------------------------------------------------------------------------
# Pure-JAX references
# ---------------------------------------------------------------------------

def hydra_mlp_ref(x, mlp_weights, mlp_biases, lm_weights, lm_biases,
                  mxu_dtype=None):
    """mxu_dtype=None -> full f32 reference; otherwise emulate the kernel's
    mixed-precision MXU feed (operands rounded, f32 accumulation)."""
    hp = jax.lax.Precision.HIGHEST

    def mm(a, w, eq):
        if mxu_dtype is not None:
            return jnp.einsum(eq, a.astype(mxu_dtype), w.astype(mxu_dtype),
                              preferred_element_type=jnp.float32)
        return jnp.einsum(eq, a, w, precision=hp)

    logits, hiddens = [], []
    for hw, hb, lw, lb in zip(mlp_weights, mlp_biases, lm_weights, lm_biases):
        h = x.astype(jnp.float32)
        for w, b in zip(hw, hb):
            t = mm(h, w, "bsh,oh->bso") + b
            h = h + t * jax.nn.sigmoid(t)
        hiddens.append(h.astype(x.dtype))
        logits.append((mm(h.astype(x.dtype), lw, "bsh,vh->bsv") + lb).astype(x.dtype))
    return logits, hiddens


# ---------------------------------------------------------------------------
# Self-test
# ---------------------------------------------------------------------------

if __name__ == "__main__":
    batch, seq, hidden, vocab = 2, 8, 128, 256
    num_heads, num_layers = 2, 2

    n_keys = 1 + num_heads * (2 * num_layers + 2)
    keys = iter(jax.random.split(jax.random.PRNGKey(0), n_keys))

    x = jax.random.normal(next(keys), (batch, seq, hidden), dtype=jnp.float32)

    # NOTE: the PyTorch module zero-initializes the ResBlock linear weights;
    # the test uses random weights so the MXU / fused-stack path is actually
    # exercised numerically.
    bound = 1.0 / (hidden ** 0.5)
    mlp_w, mlp_b, lm_w, lm_b = [], [], [], []
    for _ in range(num_heads):
        ws, bs = [], []
        for _ in range(num_layers):
            ws.append(0.05 * jax.random.normal(next(keys), (hidden, hidden),
                                               dtype=jnp.float32))
            bs.append(jax.random.uniform(next(keys), (hidden,),
                                         minval=-bound, maxval=bound,
                                         dtype=jnp.float32))
        mlp_w.append(ws)
        mlp_b.append(bs)
        lm_w.append(0.05 * jax.random.normal(next(keys), (vocab, hidden),
                                             dtype=jnp.float32))
        lm_b.append(jax.random.uniform(next(keys), (vocab,),
                                       minval=-bound, maxval=bound,
                                       dtype=jnp.float32))

    logits, hiddens = hydra_mlp_forward(x, mlp_w, mlp_b, lm_w, lm_b)
    logits = [jax.block_until_ready(l) for l in logits]
    hiddens = [jax.block_until_ready(h) for h in hiddens]

    # Tight check vs. a reference that emulates the bf16 MXU feed (f32 accum).
    ref_logits, ref_hidden = hydra_mlp_ref(x, mlp_w, mlp_b, lm_w, lm_b,
                                           mxu_dtype=jnp.bfloat16)
    for got, exp in zip(hiddens, ref_hidden):
        assert jnp.allclose(got, exp, atol=2e-3, rtol=2e-3), "hidden mismatch (bf16 ref)"
    for got, exp in zip(logits, ref_logits):
        assert jnp.allclose(got, exp, atol=2e-3, rtol=2e-3), "logits mismatch (bf16 ref)"

    # Loose check vs. the full-f32 reference (bounds the bf16-feed error).
    ref_logits32, ref_hidden32 = hydra_mlp_ref(x, mlp_w, mlp_b, lm_w, lm_b)
    for got, exp in zip(hiddens, ref_hidden32):
        assert jnp.allclose(got, exp, atol=6e-2, rtol=6e-2), "hidden mismatch (f32 ref)"
    for got, exp in zip(logits, ref_logits32):
        assert jnp.allclose(got, exp, atol=6e-2, rtol=6e-2), "logits mismatch (f32 ref)"

    print("KERNEL_OK")
</pallas_src>

<mosaic_0001>
module attributes {stable_mosaic.version = 11 : i64} {
  func.func @_resblock_stack_kernel(%arg0: i32, %arg1: i32, %arg2: i32, %arg3: i32, %arg4: memref<128x128xf32, #tpu.memory_space<vmem>>, %arg5: memref<1x1x128x128xbf16, #tpu.memory_space<vmem>>, %arg6: memref<1x1x1x128xf32, #tpu.memory_space<vmem>>, %arg7: memref<1x128x128xf32, #tpu.memory_space<vmem>>, %arg8: memref<128x128xf32, #tpu.memory_space<vmem>>, %arg9: memref<128x128xf32, #tpu.memory_space<vmem>>) attributes {dimension_semantics = [#tpu.dimension_semantics<parallel>, #tpu.dimension_semantics<parallel>, #tpu.dimension_semantics<arbitrary>, #tpu.dimension_semantics<arbitrary>], iteration_bounds = array<i64: 2, 1, 2, 1>, scalar_prefetch = 0 : i64, scratch_operands = 2 : i64, tpu.core_type = #tpu.core_type<tc>, window_params = [{transform_indices = @transform_0, window_bounds = array<i64: 128, 128>}, {transform_indices = @transform_1, window_bounds = array<i64: 1, 1, 128, 128>}, {transform_indices = @transform_2, window_bounds = array<i64: 1, 1, 1, 128>}, {transform_indices = @transform_3, window_bounds = array<i64: 1, 128, 128>}]} {
    %c0_i32 = arith.constant 0 : i32
    %0 = arith.cmpi eq, %arg2, %c0_i32 : i32
    %c0_i32_0 = arith.constant 0 : i32
    %1 = arith.cmpi eq, %arg3, %c0_i32_0 : i32
    %2 = arith.andi %0, %1 : i1
    %3 = arith.extui %2 : i1 to i32
    %c0_i32_1 = arith.constant 0 : i32
    %4 = arith.cmpi ne, %3, %c0_i32_1 : i32
    scf.if %4 {
      %c0_17 = arith.constant 0 : index
      %c0_18 = arith.constant 0 : index
      %24 = vector.load %arg4[%c0_17, %c0_18] : memref<128x128xf32, #tpu.memory_space<vmem>>, vector<128x128xf32>
      %c0_19 = arith.constant 0 : index
      %c0_20 = arith.constant 0 : index
      %25 = vector.load %arg8[%c0_19, %c0_20] : memref<128x128xf32, #tpu.memory_space<vmem>>, vector<128x128xf32>
      tpu.vector_store %arg8[%c0_19, %c0_20], %24 {strides = array<i32>} : memref<128x128xf32, #tpu.memory_space<vmem>>, vector<128x128xf32>,
    } else {
    }
    %c0_i32_2 = arith.constant 0 : i32
    %5 = arith.cmpi eq, %arg3, %c0_i32_2 : i32
    %6 = arith.extui %5 : i1 to i32
    %c0_i32_3 = arith.constant 0 : i32
    %7 = arith.cmpi ne, %6, %c0_i32_3 : i32
    scf.if %7 {
      %cst_17 = arith.constant 0.000000e+00 : f32
      %24 = vector.broadcast %cst_17 : f32 to vector<128x128xf32>
      %c0_18 = arith.constant 0 : index
      %c0_19 = arith.constant 0 : index
      %25 = vector.load %arg9[%c0_18, %c0_19] : memref<128x128xf32, #tpu.memory_space<vmem>>, vector<128x128xf32>
      tpu.vector_store %arg9[%c0_18, %c0_19], %24 {strides = array<i32>} : memref<128x128xf32, #tpu.memory_space<vmem>>, vector<128x128xf32>,
    } else {
    }
    %c0 = arith.constant 0 : index
    %c0_4 = arith.constant 0 : index
    %8 = vector.load %arg8[%c0, %c0_4] : memref<128x128xf32, #tpu.memory_space<vmem>>, vector<128x128xf32>
    %c0_5 = arith.constant 0 : index
    %c0_6 = arith.constant 0 : index
    %9 = vector.load %arg9[%c0_5, %c0_6] : memref<128x128xf32, #tpu.memory_space<vmem>>, vector<128x128xf32>
    %10 = arith.truncf %8 : vector<128x128xf32> to vector<128x128xbf16>
    %c0_7 = arith.constant 0 : index
    %c0_8 = arith.constant 0 : index
    %c0_9 = arith.constant 0 : index
    %c0_10 = arith.constant 0 : index
    %11 = vector.load %arg5[%c0_7, %c0_8, %c0_9, %c0_10] : memref<1x1x128x128xbf16, #tpu.memory_space<vmem>>, vector<1x1x128x128xbf16>
    %12 = vector.shape_cast %11 : vector<1x1x128x128xbf16> to vector<128x128xbf16>
    %cst = arith.constant dense<0.000000e+00> : vector<128x128xf32>
    %13 = tpu.matmul %10, %12, %cst {dimension_numbers = #tpu.dot_dimension_numbers<[1], [1], [0], [0], [0, 0, 1, 0], [], []>} : vector<128x128xbf16>, vector<128x128xbf16>, vector<128x128xf32> -> vector<128x128xf32>
    %14 = arith.addf %9, %13 : vector<128x128xf32>
    %c0_11 = arith.constant 0 : index
    %c0_12 = arith.constant 0 : index
    %15 = vector.load %arg9[%c0_11, %c0_12] : memref<128x128xf32, #tpu.memory_space<vmem>>, vector<128x128xf32>
    tpu.vector_store %arg9[%c0_11, %c0_12], %14 {strides = array<i32>} : memref<128x128xf32, #tpu.memory_space<vmem>>, vector<128x128xf32>,
    %c0_i32_13 = arith.constant 0 : i32
    %16 = arith.cmpi eq, %arg3, %c0_i32_13 : i32
    %17 = arith.extui %16 : i1 to i32
    %c0_i32_14 = arith.constant 0 : i32
    %18 = arith.cmpi ne, %17, %c0_i32_14 : i32
    scf.if %18 {
      %c0_17 = arith.constant 0 : index
      %c0_18 = arith.constant 0 : index
      %24 = vector.load %arg9[%c0_17, %c0_18] : memref<128x128xf32, #tpu.memory_space<vmem>>, vector<128x128xf32>
      %c0_19 = arith.constant 0 : index
      %c0_20 = arith.constant 0 : index
      %c0_21 = arith.constant 0 : index
      %c0_22 = arith.constant 0 : index
      %25 = vector.load %arg6[%c0_19, %c0_20, %c0_21, %c0_22] : memref<1x1x1x128xf32, #tpu.memory_space<vmem>>, vector<1x1x1x128xf32>
      %26 = vector.shape_cast %25 : vector<1x1x1x128xf32> to vector<1x128xf32>
      %27 = vector.broadcast %26 : vector<1x128xf32> to vector<128x128xf32>
      %28 = arith.addf %24, %27 : vector<128x128xf32>
      %c0_23 = arith.constant 0 : index
      %c0_24 = arith.constant 0 : index
      %29 = vector.load %arg8[%c0_23, %c0_24] : memref<128x128xf32, #tpu.memory_space<vmem>>, vector<128x128xf32>
      %30 = arith.negf %28 : vector<128x128xf32>
      %31 = math.exp %30 : vector<128x128xf32>
      %cst_25 = arith.constant 1.000000e+00 : f32
      %32 = vector.broadcast %cst_25 : f32 to vector<128x128xf32>
      %33 = arith.addf %32, %31 : vector<128x128xf32>
      %34 = arith.divf %32, %33 : vector<128x128xf32>
      %35 = arith.mulf %28, %34 : vector<128x128xf32>
      %36 = arith.addf %29, %35 : vector<128x128xf32>
      %c0_26 = arith.constant 0 : index
      %c0_27 = arith.constant 0 : index
      %37 = vector.load %arg8[%c0_26, %c0_27] : memref<128x128xf32, #tpu.memory_space<vmem>>, vector<128x128xf32>
      tpu.vector_store %arg8[%c0_26, %c0_27], %36 {strides = array<i32>} : memref<128x128xf32, #tpu.memory_space<vmem>>, vector<128x128xf32>,
    } else {
    }
    %c0_i32_15 = arith.constant 0 : i32
    %19 = arith.cmpi eq, %arg3, %c0_i32_15 : i32
    %c1_i32 = arith.constant 1 : i32
    %20 = arith.cmpi eq, %arg2, %c1_i32 : i32
    %21 = arith.andi %19, %20 : i1
    %22 = arith.extui %21 : i1 to i32
    %c0_i32_16 = arith.constant 0 : i32
    %23 = arith.cmpi ne, %22, %c0_i32_16 : i32
    scf.if %23 {
      %c0_17 = arith.constant 0 : index
      %c0_18 = arith.constant 0 : index
      %24 = vector.load %arg8[%c0_17, %c0_18] : memref<128x128xf32, #tpu.memory_space<vmem>>, vector<128x128xf32>
      %c0_19 = arith.constant 0 : index
      %c0_20 = arith.constant 0 : index
      %c0_21 = arith.constant 0 : index
      %25 = vector.load %arg7[%c0_19, %c0_20, %c0_21] : memref<1x128x128xf32, #tpu.memory_space<vmem>>, vector<1x128x128xf32>
      %26 = vector.shape_cast %25 : vector<1x128x128xf32> to vector<128x128xf32>
      %27 = vector.shape_cast %24 : vector<128x128xf32> to vector<1x128x128xf32>
      tpu.vector_store %arg7[%c0_19, %c0_20, %c0_21], %27 {strides = array<i32>} : memref<1x128x128xf32, #tpu.memory_space<vmem>>, vector<1x128x128xf32>,
    } else {
    }
    return
  }
  func.func @transform_0(%arg0: i32, %arg1: i32, %arg2: i32, %arg3: i32) -> (i32, i32) {
    %c0_i32 = arith.constant 0 : i32
    %c0_i32_0 = arith.constant 0 : i32
    return %arg1, %c0_i32 : i32, i32
  }
  func.func @transform_1(%arg0: i32, %arg1: i32, %arg2: i32, %arg3: i32) -> (i32, i32, i32, i32) {
    %c0_i32 = arith.constant 0 : i32
    %c0_i32_0 = arith.constant 0 : i32
    return %arg0, %arg2, %c0_i32, %arg3 : i32, i32, i32, i32
  }
  func.func @transform_2(%arg0: i32, %arg1: i32, %arg2: i32, %arg3: i32) -> (i32, i32, i32, i32) {
    %c0_i32 = arith.constant 0 : i32
    %c0_i32_0 = arith.constant 0 : i32
    %c0_i32_1 = arith.constant 0 : i32
    return %arg0, %arg2, %c0_i32, %c0_i32_0 : i32, i32, i32, i32
  }
  func.func @transform_3(%arg0: i32, %arg1: i32, %arg2: i32, %arg3: i32) -> (i32, i32, i32) {
    %c0_i32 = arith.constant 0 : i32
    %c0_i32_0 = arith.constant 0 : i32
    return %arg0, %arg1, %c0_i32 : i32, i32, i32
  }
}

</mosaic_0001>

<llo_original>
// kernel: tpu_custom_call.1
$region0: #{tpu_custom_call.1}
  #allocation0 [shape = 'u32[]', space=smem, size = 0x4, offset = 0x4, fixed_abs, tag = 'smem constant byte address 0x4 - core index']
  #allocation1 [shape = 'u32[144,128]{1,0:T(1,128)}', space=vmem, size = 0x12000, scoped, tag = 'internal scratch']
  #allocation2 [shape = 'f32[128,128]{1,0:T(8,128)}', space=vmem, size = 0x10000, scoped, tag = 'scratch operand']
  #allocation3 [shape = 'f32[128,128]{1,0:T(8,128)}', space=vmem, size = 0x10000, scoped, tag = 'scratch operand']
  %s0 = inlined_call_operand.hbm [shape: f32[128,128], index: 0, kind: input, shape index: {}]
  %s1 = inlined_call_operand.hbm [shape: bf16[2,2,128,128], index: 1, kind: input, shape index: {}]
  %s2 = inlined_call_operand.vmem [shape: f32[2,2,1,128], index: 2, kind: input, shape index: {}]
  %s3 = inlined_call_operand.hbm [shape: f32[2,128,128], index: 3, kind: output, shape index: {}]
  %s4 = sld [smem:[#allocation0]]
  $region69: #{tpu_custom_call.1} parent=0
    _
  %s6 = ssub.s32 1, %s4
  %s7 = scalar_select 0, %s6, %s4
  $region1: #{tpu_custom_call.1} parent=0
    #allocation4 [shape = 'u8[65536]{0}', space=vmem, size = 0x10000, scoped, tag = 'input window, operand 0, single buffered']
    #allocation5 [shape = 's32[2]{0}', space=sflag, size = 0x8, scoped, tag = 'scoped memory for tpu_custom_call.1']
    #allocation6 [shape = 's32[2]{0}', space=sflag, size = 0x8, scoped, tag = 'scoped memory for tpu_custom_call.1']
    #allocation7 [shape = 'u8[65536]{0}', space=vmem, size = 0x10000, scoped, tag = 'input window, operand 1']
    #allocation8 [shape = 's32[2]{0}', space=sflag, size = 0x8, scoped, tag = 'scoped memory for tpu_custom_call.1']
    #allocation9 [shape = 'u8[131072]{0}', space=vmem, size = 0x20000, scoped, tag = 'output window, operand 0']
    %8 = vsyncpa [#allocation5], 0
    %9 = vsyncpa [#allocation8], 0
    %s10 = scalar_lea.sflag [#allocation8], 1
    %11 = vsyncpa %s10, 0
    %12 = vsyncpa [#allocation6], 0
    %s13 = scalar_lea.sflag [#allocation6], 1
    %14 = vsyncpa %s13, 0
    loop: start=0, step=1, limit=6
    $region2: #{tpu_custom_call.1} parent=1 // loop_pre_header
      _
    $region3: #{tpu_custom_call.1} parent=1 // loop_header
      %s16 = sphi 0, %s20
      %p17 = scmp.ge.s32.totalorder %s16, 6
      %s23 = sphi 0, %s49
      %s24 = sphi 0, %s45
      %s25 = sphi 0, %s41
      %s26 = sphi 0, %s37
      %s27 = sphi 0, %s23
      %s28 = sphi 0, %s24
      %s29 = sphi 0, %s25
      %s30 = sphi 0, %s26
      %s31 = sphi 0, %s27
      %s32 = sphi 0, %s28
      %s33 = sphi 0, %s29
      %s34 = sphi 0, %s30
      %s52 = sphi 0, %s54
      %s55 = sphi 0, %s52
      %s56 = sphi 0, %s55
      %s72 = sphi 0, %s56
      %s82 = sphi 0, %s84
      %s85 = sphi 0, %s82
      %s86 = sphi 0, %s85
      %s102 = sphi 0, %s86
      %s110 = sphi 0, %s112
      %s113 = sphi 0, %s110
      %s114 = sphi 0, %s113
      %s130 = sphi 0, %s114
      %s138 = sphi 0, %s140
      %s141 = sphi 0, %s138
      %s142 = sphi 0, %s141
      %s158 = sphi 0, %s142
    $region4: #{tpu_custom_call.1} parent=1 // loop_header_branch
      %19 = sbr.rel (%p17) target = $region8
    $region5: #{tpu_custom_call.1} parent=1 // loop_body
      %s21 = ssub.s32 %s16, 1
      %s22 = ssub.s32 %s16, 2
      %s35 = sadd.s32 1, %s26
      %p36 = scmp.ge.s32.totalorder %s35, 1
      %s37 = scalar_select %p36, 0, %s35
      %s38 = sadd.s32 1, %s25
      %s39 = scalar_select %p36, %s38, %s25
      %p40 = scmp.ge.s32.totalorder %s39, 2
      %s41 = scalar_select %p40, 0, %s39
      %s42 = sadd.s32 1, %s24
      %s43 = scalar_select %p40, %s42, %s24
      %p44 = scmp.ge.s32.totalorder %s43, 1
      %s45 = scalar_select %p44, 0, %s43
      %s46 = sadd.s32 1, %s23
      %s47 = scalar_select %p44, %s46, %s23
      %p48 = scmp.ge.s32.totalorder %s47, 2
      %s49 = scalar_select %p48, 0, %s47
      %s50 = ssub.s32 %s24, %s45
      %p51 = scmp.eq.s32.totalorder %s50, 0
      %s53 = sadd.s32 %s52, 1
      %s54 = scalar_select %p51, %s52, %s53
      %p57 = pneg %p51
      %p58 = scmp.eq.s32.totalorder %s16, 3
      %p59 = por %p57, %p58
      %p60 = scmp.ne.s32.totalorder %s52, %s55
      %p61 = scmp.eq.s32.totalorder %s16, 0
      %p62 = por %p60, %p61
      %p63 = scmp.ne.s32.totalorder %s52, %s55
      %p64 = scmp.eq.s32.totalorder %s21, 3
      %p65 = por %p63, %p64
      %p66 = scmp.ne.s32.totalorder %s55, %s56
      %p67 = scmp.eq.s32.totalorder %s21, 0
      %p68 = por %p66, %p67
      %p69 = scmp.ne.s32.totalorder %s55, %s56
      %p70 = scmp.eq.s32.totalorder %s22, 3
      %p71 = por %p69, %p70
      %p73 = scmp.ne.s32.totalorder %s56, %s72
      %p74 = scmp.eq.s32.totalorder %s22, 0
      %p75 = por %p73, %p74
      %s76 = ssub.s32 %s23, %s49
      %s77 = ssub.s32 %s25, %s41
      %s78 = sor.u32 %s76, %s77
      %s79 = ssub.s32 %s26, %s37
      %s80 = sor.u32 %s78, %s79
      %p81 = scmp.eq.s32.totalorder %s80, 0
      %s83 = sadd.s32 %s82, 1
      %s84 = scalar_select %p81, %s82, %s83
      %p87 = pneg %p81
      %p88 = scmp.eq.s32.totalorder %s16, 3
      %p89 = por %p87, %p88
      %p90 = scmp.ne.s32.totalorder %s82, %s85
      %p91 = scmp.eq.s32.totalorder %s16, 0
      %p92 = por %p90, %p91
      %p93 = scmp.ne.s32.totalorder %s82, %s85
      %p94 = scmp.eq.s32.totalorder %s21, 3
      %p95 = por %p93, %p94
      %p96 = scmp.ne.s32.totalorder %s85, %s86
      %p97 = scmp.eq.s32.totalorder %s21, 0
      %p98 = por %p96, %p97
      %p99 = scmp.ne.s32.totalorder %s85, %s86
      %p100 = scmp.eq.s32.totalorder %s22, 3
      %p101 = por %p99, %p100
      %p103 = scmp.ne.s32.totalorder %s86, %s102
      %p104 = scmp.eq.s32.totalorder %s22, 0
      %p105 = por %p103, %p104
      %s106 = ssub.s32 %s23, %s49
      %s107 = ssub.s32 %s25, %s41
      %s108 = sor.u32 %s106, %s107
      %p109 = scmp.eq.s32.totalorder %s108, 0
      %s111 = sadd.s32 %s110, 1
      %s112 = scalar_select %p109, %s110, %s111
      %p115 = pneg %p109
      %p116 = scmp.eq.s32.totalorder %s16, 3
      %p117 = por %p115, %p116
      %p118 = scmp.ne.s32.totalorder %s110, %s113
      %p119 = scmp.eq.s32.totalorder %s16, 0
      %p120 = por %p118, %p119
      %p121 = scmp.ne.s32.totalorder %s110, %s113
      %p122 = scmp.eq.s32.totalorder %s21, 3
      %p123 = por %p121, %p122
      %p124 = scmp.ne.s32.totalorder %s113, %s114
      %p125 = scmp.eq.s32.totalorder %s21, 0
      %p126 = por %p124, %p125
      %p127 = scmp.ne.s32.totalorder %s113, %s114
      %p128 = scmp.eq.s32.totalorder %s22, 3
      %p129 = por %p127, %p128
      %p131 = scmp.ne.s32.totalorder %s114, %s130
      %p132 = scmp.eq.s32.totalorder %s22, 0
      %p133 = por %p131, %p132
      %s134 = ssub.s32 %s23, %s49
      %s135 = ssub.s32 %s24, %s45
      %s136 = sor.u32 %s134, %s135
      %p137 = scmp.eq.s32.totalorder %s136, 0
      %s139 = sadd.s32 %s138, 1
      %s140 = scalar_select %p137, %s138, %s139
      %p143 = pneg %p137
      %p144 = scmp.eq.s32.totalorder %s16, 3
      %p145 = por %p143, %p144
      %p146 = scmp.ne.s32.totalorder %s138, %s141
      %p147 = scmp.eq.s32.totalorder %s16, 0
      %p148 = por %p146, %p147
      %p149 = scmp.ne.s32.totalorder %s138, %s141
      %p150 = scmp.eq.s32.totalorder %s21, 3
      %p151 = por %p149, %p150
      %p152 = scmp.ne.s32.totalorder %s141, %s142
      %p153 = scmp.eq.s32.totalorder %s21, 0
      %p154 = por %p152, %p153
      %p155 = scmp.ne.s32.totalorder %s141, %s142
      %p156 = scmp.eq.s32.totalorder %s22, 3
      %p157 = por %p155, %p156
      %p159 = scmp.ne.s32.totalorder %s142, %s158
      %p160 = scmp.eq.s32.totalorder %s22, 0
      %p161 = por %p159, %p160
      %p162 = scmp.le.s32.totalorder 1, %s16
      %p163 = scmp.lt.s32.totalorder %s16, 5
      %p164 = pnand %p162, %p163
      %p165 = pneg %p164
      // Predicated region
      $region9: #{tpu_custom_call.1} parent=5 // pred_check
        _
      $region10: #{tpu_custom_call.1} parent=5 // pred_check_branch
        %167 = sbr.rel (%p164) target = $region12
      $region11: #{tpu_custom_call.1} parent=5 // pred_region
        %s168 = ssub.s32 %s16, 1
        // Predicated region
        $region13: #{tpu_custom_call.1} parent=11 // pred_check
          %p169 = pneg %p68
        $region14: #{tpu_custom_call.1} parent=11 // pred_check_branch
          %171 = sbr.rel (%p169) target = $region16
        $region15: #{tpu_custom_call.1} parent=11 // pred_region
          %s172 = smul.u32 16, %s28
          %s174 = ssub.s32 2048, 2048
          %175 = vsyncadd [#allocation5], %s174
          %s176 = smul.addr %s172, 128
          %s177 = scalar_lea.hbm %s0, %s176
          %s178 = sshll.u32 [#allocation4], 4
          %s179 = int_to_ptr.vmem [resolvable:$true] %s178
          %184 = dma.hbm_to_vmem [thread:$0]  %s177, 2048, %s179, [#allocation5], 128, 128, 8
        $region16: #{tpu_custom_call.1} parent=11 // pred_fallthru
          _
      $region12: #{tpu_custom_call.1} parent=5 // pred_fallthru
        _
      %p185 = scmp.lt.s32.totalorder %s16, 4
      // Predicated region
      $region17: #{tpu_custom_call.1} parent=5 // pred_check
        %p186 = pneg %p185
      $region18: #{tpu_custom_call.1} parent=5 // pred_check_branch
        %188 = sbr.rel (%p186) target = $region20
      $region19: #{tpu_custom_call.1} parent=5 // pred_region
        // Predicated region
        $region21: #{tpu_custom_call.1} parent=19 // pred_check
          %p189 = pneg %p92
        $region22: #{tpu_custom_call.1} parent=19 // pred_check_branch
          %191 = sbr.rel (%p189) target = $region24
        $region23: #{tpu_custom_call.1} parent=19 // pred_region
          %s192 = sand.u32 %s82, 1
          %s193 = scalar_lea.sflag [#allocation8], %s192
          %s194 = sand.u32 %s82, 1
          %s195 = smul.addr %s194, 64
          %s196 = scalar_lea.vmem [#allocation7], %s195
          %s198 = ssub.s32 1024, 1024
          %199 = vsyncadd %s193, %s198
          %s200 = smul.addr %s25, 16
          %s201 = sadd.s32 %s26, %s200
          %s202 = smul.addr %s23, 32
          %s203 = sadd.s32 %s201, %s202
          %s204 = smul.addr %s203, 64
          %s205 = scalar_lea.hbm %s1, %s204
          %s206 = sshll.u32 %s196, 4
          %s207 = int_to_ptr.vmem [resolvable:$true] %s206
          %212 = dma.hbm_to_vmem [thread:$0]  %s205, 1024, %s207, %s193, 64, 64, 4
        $region24: #{tpu_custom_call.1} parent=19 // pred_fallthru
          _
        // Predicated region
        $region25: #{tpu_custom_call.1} parent=19 // pred_check
          %p213 = pneg %p120
        $region26: #{tpu_custom_call.1} parent=19 // pred_check_branch
          %215 = sbr.rel (%p213) target = $region28
        $region27: #{tpu_custom_call.1} parent=19 // pred_region
          %p216 = scmp.lt.s32.totalorder %s23, 1
          %s217 = scalar_select %p216, %s23, 1
          %p218 = scmp.lt.s32.totalorder %s25, 1
          %s219 = scalar_select %p218, %s25, 1
          %s220 = smul.addr %s217, 2
          %s221 = sadd.s32 %s219, %s220
          %s222 = scalar_lea.vmem %s2, %s221
        $region28: #{tpu_custom_call.1} parent=19 // pred_fallthru
          _
      $region20: #{tpu_custom_call.1} parent=5 // pred_fallthru
        _
      %p223 = scmp.le.s32.totalorder 1, %s16
      %p224 = scmp.lt.s32.totalorder %s16, 5
      %p225 = pnand %p223, %p224
      %p226 = pneg %p225
      // Predicated region
      $region29: #{tpu_custom_call.1} parent=5 // pred_check
        _
      $region30: #{tpu_custom_call.1} parent=5 // pred_check_branch
        %228 = sbr.rel (%p225) target = $region32
      $region31: #{tpu_custom_call.1} parent=5 // pred_region
        %s229 = ssub.s32 %s16, 1
        // Predicated region
        $region33: #{tpu_custom_call.1} parent=31 // pred_check
          %p230 = pneg %p68
        $region34: #{tpu_custom_call.1} parent=31 // pred_check_branch
          %232 = sbr.rel (%p230) target = $region36
        $region35: #{tpu_custom_call.1} parent=31 // pred_region
          %233 = dma.done [#allocation5], 2048
        $region36: #{tpu_custom_call.1} parent=31 // pred_fallthru
          _
        %s234 = sand.u32 %s85, 1
        %s235 = scalar_lea.sflag [#allocation8], %s234
        %s236 = sand.u32 %s85, 1
        %s237 = smul.addr %s236, 64
        %s238 = scalar_lea.vmem [#allocation7], %s237
        // Predicated region
        $region37: #{tpu_custom_call.1} parent=31 // pred_check
          %p239 = pneg %p98
        $region38: #{tpu_custom_call.1} parent=31 // pred_check_branch
          %241 = sbr.rel (%p239) target = $region40
        $region39: #{tpu_custom_call.1} parent=31 // pred_region
          %242 = dma.done %s235, 1024
        $region40: #{tpu_custom_call.1} parent=31 // pred_fallthru
          _
        %p243 = pneg %p68
        %p244 = pneg %p65
        %s245 = sand.u32 %s85, 1
        %s246 = scalar_lea.sflag [#allocation8], %s245
        %s247 = sand.u32 %s85, 1
        %s248 = smul.addr %s247, 64
        %s249 = scalar_lea.vmem [#allocation7], %s248
        %p250 = pneg %p98
        %p251 = pneg %p95
        %p252 = scmp.lt.s32.totalorder %s27, 1
        %s253 = scalar_select %p252, %s27, 1
        %p254 = scmp.lt.s32.totalorder %s29, 1
        %s255 = scalar_select %p254, %s29, 1
        %s256 = smul.addr %s253, 2
        %s257 = sadd.s32 %s255, %s256
        %s258 = scalar_lea.vmem %s2, %s257
        %p259 = pneg %p126
        %p260 = pneg %p123
        %p261 = pneg %p154
        %p262 = pneg %p151
        %s263 = sand.u32 %s141, 1
        %s264 = scalar_lea.sflag [#allocation6], %s263
        %s265 = sand.u32 %s141, 1
        %s266 = smul.addr %s265, 128
        %s267 = scalar_lea.vmem [#allocation9], %s266
        %s268 = smul.u32 16, %s28
        %p269 = scmp.lt.s32.totalorder %s27, 1
        %s270 = scalar_select %p269, %s27, 1
        %p271 = scmp.lt.s32.totalorder %s29, 1
        %s272 = scalar_select %p271, %s29, 1
        %s273 = smul.addr %s270, 2
        %s274 = sadd.s32 %s272, %s273
        %s275 = scalar_lea.vmem %s2, %s274
        %s276 = smul.u32 16, %s28
        %p278 = scmp.eq.s32.totalorder %s29, 0
        %p279 = scmp.eq.s32.totalorder %s30, 0
        %p280 = pnand %p278, %p279
        %p281 = pneg %p280
        // Predicated region
        $region41: #{tpu_custom_call.1} parent=31 // pred_check
          _
        $region42: #{tpu_custom_call.1} parent=31 // pred_check_branch
          %283 = sbr.rel (%p280) target = $region44
        $region43: #{tpu_custom_call.1} parent=31 // pred_region
          %v284 = vld [vmem:[#allocation4] sm:$0xff]
          %v285 = vld [vmem:[#allocation4 + $0x8] sm:$0xff]
          %v286 = vld [vmem:[#allocation4 + $0x10] sm:$0xff]
          %v287 = vld [vmem:[#allocation4 + $0x18] sm:$0xff]
          %v288 = vld [vmem:[#allocation4 + $0x20] sm:$0xff]
          %v289 = vld [vmem:[#allocation4 + $0x28] sm:$0xff]
          %v290 = vld [vmem:[#allocation4 + $0x30] sm:$0xff]
          %v291 = vld [vmem:[#allocation4 + $0x38] sm:$0xff]
          %v292 = vld [vmem:[#allocation4 + $0x40] sm:$0xff]
          %v293 = vld [vmem:[#allocation4 + $0x48] sm:$0xff]
          %v294 = vld [vmem:[#allocation4 + $0x50] sm:$0xff]
          %v295 = vld [vmem:[#allocation4 + $0x58] sm:$0xff]
          %v296 = vld [vmem:[#allocation4 + $0x60] sm:$0xff]
          %v297 = vld [vmem:[#allocation4 + $0x68] sm:$0xff]
          %v298 = vld [vmem:[#allocation4 + $0x70] sm:$0xff]
          %v299 = vld [vmem:[#allocation4 + $0x78] sm:$0xff]
          %300 = vst [vmem:[#allocation2] sm:$0xff] %v284
          %301 = vst [vmem:[#allocation2 + $0x8] sm:$0xff] %v285
          %302 = vst [vmem:[#allocation2 + $0x10] sm:$0xff] %v286
          %303 = vst [vmem:[#allocation2 + $0x18] sm:$0xff] %v287
          %304 = vst [vmem:[#allocation2 + $0x20] sm:$0xff] %v288
          %305 = vst [vmem:[#allocation2 + $0x28] sm:$0xff] %v289
          %306 = vst [vmem:[#allocation2 + $0x30] sm:$0xff] %v290
          %307 = vst [vmem:[#allocation2 + $0x38] sm:$0xff] %v291
          %308 = vst [vmem:[#allocation2 + $0x40] sm:$0xff] %v292
          %309 = vst [vmem:[#allocation2 + $0x48] sm:$0xff] %v293
          %310 = vst [vmem:[#allocation2 + $0x50] sm:$0xff] %v294
          %311 = vst [vmem:[#allocation2 + $0x58] sm:$0xff] %v295
          %312 = vst [vmem:[#allocation2 + $0x60] sm:$0xff] %v296
          %313 = vst [vmem:[#allocation2 + $0x68] sm:$0xff] %v297
          %314 = vst [vmem:[#allocation2 + $0x70] sm:$0xff] %v298
          %315 = vst [vmem:[#allocation2 + $0x78] sm:$0xff] %v299
        $region44: #{tpu_custom_call.1} parent=31 // pred_fallthru
          _
        // Predicated region
        $region45: #{tpu_custom_call.1} parent=31 // pred_check
          %p316 = pneg %p279
        $region46: #{tpu_custom_call.1} parent=31 // pred_check_branch
          %318 = sbr.rel (%p316) target = $region48
        $region47: #{tpu_custom_call.1} parent=31 // pred_region
          %319 = vst [vmem:[#allocation3] sm:$0xff] 0.0
          %320 = vst [vmem:[#allocation3 + $0x8] sm:$0xff] 0.0
          %321 = vst [vmem:[#allocation3 + $0x10] sm:$0xff] 0.0
          %322 = vst [vmem:[#allocation3 + $0x18] sm:$0xff] 0.0
          %323 = vst [vmem:[#allocation3 + $0x20] sm:$0xff] 0.0
          %324 = vst [vmem:[#allocation3 + $0x28] sm:$0xff] 0.0
          %325 = vst [vmem:[#allocation3 + $0x30] sm:$0xff] 0.0
          %326 = vst [vmem:[#allocation3 + $0x38] sm:$0xff] 0.0
          %327 = vst [vmem:[#allocation3 + $0x40] sm:$0xff] 0.0
          %328 = vst [vmem:[#allocation3 + $0x48] sm:$0xff] 0.0
          %329 = vst [vmem:[#allocation3 + $0x50] sm:$0xff] 0.0
          %330 = vst [vmem:[#allocation3 + $0x58] sm:$0xff] 0.0
          %331 = vst [vmem:[#allocation3 + $0x60] sm:$0xff] 0.0
          %332 = vst [vmem:[#allocation3 + $0x68] sm:$0xff] 0.0
          %333 = vst [vmem:[#allocation3 + $0x70] sm:$0xff] 0.0
          %334 = vst [vmem:[#allocation3 + $0x78] sm:$0xff] 0.0
        $region48: #{tpu_custom_call.1} parent=31 // pred_fallthru
          _
        %v335 = vld [vmem:[#allocation2] sm:$0xff]
        %v336 = vld [vmem:[#allocation2 + $0x8] sm:$0xff]
        %v337 = vld [vmem:[#allocation2 + $0x10] sm:$0xff]
        %v338 = vld [vmem:[#allocation2 + $0x18] sm:$0xff]
        %v339 = vld [vmem:[#allocation2 + $0x20] sm:$0xff]
        %v340 = vld [vmem:[#allocation2 + $0x28] sm:$0xff]
        %v341 = vld [vmem:[#allocation2 + $0x30] sm:$0xff]
        %v342 = vld [vmem:[#allocation2 + $0x38] sm:$0xff]
        %v343 = vld [vmem:[#allocation2 + $0x40] sm:$0xff]
        %v344 = vld [vmem:[#allocation2 + $0x48] sm:$0xff]
        %v345 = vld [vmem:[#allocation2 + $0x50] sm:$0xff]
        %v346 = vld [vmem:[#allocation2 + $0x58] sm:$0xff]
        %v347 = vld [vmem:[#allocation2 + $0x60] sm:$0xff]
        %v348 = vld [vmem:[#allocation2 + $0x68] sm:$0xff]
        %v349 = vld [vmem:[#allocation2 + $0x70] sm:$0xff]
        %v350 = vld [vmem:[#allocation2 + $0x78] sm:$0xff]
        %v351 = vld [vmem:[#allocation3] sm:$0xff]
        %v352 = vld [vmem:[#allocation3 + $0x8] sm:$0xff]
        %v353 = vld [vmem:[#allocation3 + $0x10] sm:$0xff]
        %v354 = vld [vmem:[#allocation3 + $0x18] sm:$0xff]
        %v355 = vld [vmem:[#allocation3 + $0x20] sm:$0xff]
        %v356 = vld [vmem:[#allocation3 + $0x28] sm:$0xff]
        %v357 = vld [vmem:[#allocation3 + $0x30] sm:$0xff]
        %v358 = vld [vmem:[#allocation3 + $0x38] sm:$0xff]
        %v359 = vld [vmem:[#allocation3 + $0x40] sm:$0xff]
        %v360 = vld [vmem:[#allocation3 + $0x48] sm:$0xff]
        %v361 = vld [vmem:[#allocation3 + $0x50] sm:$0xff]
        %v362 = vld [vmem:[#allocation3 + $0x58] sm:$0xff]
        %v363 = vld [vmem:[#allocation3 + $0x60] sm:$0xff]
        %v364 = vld [vmem:[#allocation3 + $0x68] sm:$0xff]
        %v365 = vld [vmem:[#allocation3 + $0x70] sm:$0xff]
        %v366 = vld [vmem:[#allocation3 + $0x78] sm:$0xff]
        %v367 = vpack.c.bf16 %v336, %v335
        %v368 = vpack.c.bf16 %v338, %v337
        %v369 = vpack.c.bf16 %v340, %v339
        %v370 = vpack.c.bf16 %v342, %v341
        %v371 = vpack.c.bf16 %v344, %v343
        %v372 = vpack.c.bf16 %v346, %v345
        %v373 = vpack.c.bf16 %v348, %v347
        %v374 = vpack.c.bf16 %v350, %v349
        %v375 = vld [vmem:[%s238] sm:$0xf]
        %v376 = vld [vmem:[%s238 + $0x4] sm:$0xf]
        %v377 = vld [vmem:[%s238 + $0x8] sm:$0xf]
        %v378 = vld [vmem:[%s238 + $0xc] sm:$0xf]
        %v379 = vld [vmem:[%s238 + $0x10] sm:$0xf]
        %v380 = vld [vmem:[%s238 + $0x14] sm:$0xf]
        %v381 = vld [vmem:[%s238 + $0x18] sm:$0xf]
        %v382 = vld [vmem:[%s238 + $0x1c] sm:$0xf]
        %v383 = vld [vmem:[%s238 + $0x20] sm:$0xf]
        %v384 = vld [vmem:[%s238 + $0x24] sm:$0xf]
        %v385 = vld [vmem:[%s238 + $0x28] sm:$0xf]
        %v386 = vld [vmem:[%s238 + $0x2c] sm:$0xf]
        %v387 = vld [vmem:[%s238 + $0x30] sm:$0xf]
        %v388 = vld [vmem:[%s238 + $0x34] sm:$0xf]
        %v389 = vld [vmem:[%s238 + $0x38] sm:$0xf]
        %v390 = vld [vmem:[%s238 + $0x3c] sm:$0xf]
        %v407 = vunpack.c.l.b16 %v375
        %v408 = vunpack.c.l.b16 %v376
        %v409 = vunpack.c.l.b16 %v377
        %v410 = vunpack.c.l.b16 %v378
        %v411 = vunpack.c.l.b16 %v379
        %v412 = vunpack.c.l.b16 %v380
        %v413 = vunpack.c.l.b16 %v381
        %v414 = vunpack.c.l.b16 %v382
        %v415 = vunpack.c.l.b16 %v383
        %v416 = vunpack.c.l.b16 %v384
        %v417 = vunpack.c.l.b16 %v385
        %v418 = vunpack.c.l.b16 %v386
        %v419 = vunpack.c.l.b16 %v387
        %v420 = vunpack.c.l.b16 %v388
        %v421 = vunpack.c.l.b16 %v389
        %v422 = vunpack.c.l.b16 %v390
        %v423 = vpack.c.b16 %v408, %v407
        %v424 = vpack.c.b16 %v410, %v409
        %v425 = vpack.c.b16 %v412, %v411
        %v426 = vpack.c.b16 %v414, %v413
        %v427 = vpack.c.b16 %v416, %v415
        %v428 = vpack.c.b16 %v418, %v417
        %v429 = vpack.c.b16 %v420, %v419
        %v430 = vpack.c.b16 %v422, %v421
        %439 = vmatprep.subr.bf16.mxu0 0
        %440 = vmatpush1.bf16.xpose.msra.mxu0 %v423
        %441 = vmatprep.subr.bf16.mxu0 0
        %442 = vmatpush1.bf16.xpose.msra.mxu0 %v424
        %443 = vmatprep.subr.bf16.mxu0 0
        %444 = vmatpush1.bf16.xpose.msra.mxu0 %v425
        %445 = vmatprep.subr.bf16.mxu0 0
        %446 = vmatpush1.bf16.xpose.msra.mxu0 %v426
        %447 = vmatprep.subr.bf16.mxu0 0
        %448 = vmatpush1.bf16.xpose.msra.mxu0 %v427
        %449 = vmatprep.subr.bf16.mxu0 0
        %450 = vmatpush1.bf16.xpose.msra.mxu0 %v428
        %451 = vmatprep.subr.bf16.mxu0 0
        %452 = vmatpush1.bf16.xpose.msra.mxu0 %v429
        %453 = vmatprep.subr.bf16.mxu0 0
        %454 = vmatpush1.bf16.xpose.msra.mxu0 %v430
        %455 = vmatprep.subr.bf16.mxu0 0
        %456 = vmatpush1.bf16.xpose.msra.mxu0 0
        %457 = vmatprep.subr.bf16.mxu0 0
        %458 = vmatpush1.bf16.xpose.msra.mxu0 0
        %459 = vmatprep.subr.bf16.mxu0 0
        %460 = vmatpush1.bf16.xpose.msra.mxu0 0
        %461 = vmatprep.subr.bf16.mxu0 0
        %462 = vmatpush1.bf16.xpose.msra.mxu0 0
        %463 = vmatprep.subr.bf16.mxu0 0
        %464 = vmatpush1.bf16.xpose.msra.mxu0 0
        %465 = vmatprep.subr.bf16.mxu0 0
        %466 = vmatpush1.bf16.xpose.msra.mxu0 0
        %467 = vmatprep.subr.bf16.mxu0 0
        %468 = vmatpush1.bf16.xpose.msra.mxu0 0
        %469 = vmatprep.subr.bf16.mxu0 0
        %470 = vmatpush1.bf16.xpose.msra.mxu0 0
        %471 = vmatprep.mubr.bf16.mxu0 0
        %472 = vmatmul.mubr.bf16.gmra.mrb[0].mxu0 %v367
        %v473 = vpop.f32.mrb[0].mxu0
        %v474 = vadd.f32 0.0, %v473
        %v475 = vpop.f32.mrb[0].mxu0
        %v476 = vpop.f32.mrb[0].mxu0
        %v477 = vadd.f32 0.0, %v476
        %v478 = vpop.f32.mrb[0].mxu0
        %479 = vmatprep.mubr.bf16.mxu0 0
        %480 = vmatmul.mubr.bf16.gmra.mrb[0].mxu0 %v368
        %v481 = vpop.f32.mrb[0].mxu0
        %v482 = vadd.f32 0.0, %v481
        %v483 = vpop.f32.mrb[0].mxu0
        %v484 = vpop.f32.mrb[0].mxu0
        %v485 = vadd.f32 0.0, %v484
        %v486 = vpop.f32.mrb[0].mxu0
        %487 = vmatprep.mubr.bf16.mxu0 0
        %488 = vmatmul.mubr.bf16.gmra.mrb[0].mxu0 %v369
        %v489 = vpop.f32.mrb[0].mxu0
        %v490 = vadd.f32 0.0, %v489
        %v491 = vpop.f32.mrb[0].mxu0
        %v492 = vpop.f32.mrb[0].mxu0
        %v493 = vadd.f32 0.0, %v492
        %v494 = vpop.f32.mrb[0].mxu0
        %495 = vmatprep.mubr.bf16.mxu0 0
        %496 = vmatmul.mubr.bf16.gmra.mrb[0].mxu0 %v370
        %v497 = vpop.f32.mrb[0].mxu0
        %v498 = vadd.f32 0.0, %v497
        %v499 = vpop.f32.mrb[0].mxu0
        %v500 = vpop.f32.mrb[0].mxu0
        %v501 = vadd.f32 0.0, %v500
        %v502 = vpop.f32.mrb[0].mxu0
        %503 = vmatprep.mubr.bf16.mxu0 0
        %504 = vmatmul.mubr.bf16.gmra.mrb[0].mxu0 %v371
        %v505 = vpop.f32.mrb[0].mxu0
        %v506 = vadd.f32 0.0, %v505
        %v507 = vpop.f32.mrb[0].mxu0
        %v508 = vpop.f32.mrb[0].mxu0
        %v509 = vadd.f32 0.0, %v508
        %v510 = vpop.f32.mrb[0].mxu0
        %511 = vmatprep.mubr.bf16.mxu0 0
        %512 = vmatmul.mubr.bf16.gmra.mrb[0].mxu0 %v372
        %v513 = vpop.f32.mrb[0].mxu0
        %v514 = vadd.f32 0.0, %v513
        %v515 = vpop.f32.mrb[0].mxu0
        %v516 = vpop.f32.mrb[0].mxu0
        %v517 = vadd.f32 0.0, %v516
        %v518 = vpop.f32.mrb[0].mxu0
        %519 = vmatprep.mubr.bf16.mxu0 0
        %520 = vmatmul.mubr.bf16.gmra.mrb[0].mxu0 %v373
        %v521 = vpop.f32.mrb[0].mxu0
        %v522 = vadd.f32 0.0, %v521
        %v523 = vpop.f32.mrb[0].mxu0
        %v524 = vpop.f32.mrb[0].mxu0
        %v525 = vadd.f32 0.0, %v524
        %v526 = vpop.f32.mrb[0].mxu0
        %527 = vmatprep.mubr.bf16.mxu0 0
        %528 = vmatmul.mubr.bf16.gmra.mrb[0].mxu0 %v374
        %v529 = vpop.f32.mrb[0].mxu0
        %v530 = vadd.f32 0.0, %v529
        %v531 = vpop.f32.mrb[0].mxu0
        %v532 = vpop.f32.mrb[0].mxu0
        %v533 = vadd.f32 0.0, %v532
        %v534 = vpop.f32.mrb[0].mxu0
        %535 = vdwg.mxu0
        %v536 = vadd.f32 %v351, %v474
        %v537 = vadd.f32 %v352, %v477
        %v538 = vadd.f32 %v353, %v482
        %v539 = vadd.f32 %v354, %v485
        %v540 = vadd.f32 %v355, %v490
        %v541 = vadd.f32 %v356, %v493
        %v542 = vadd.f32 %v357, %v498
        %v543 = vadd.f32 %v358, %v501
        %v544 = vadd.f32 %v359, %v506
        %v545 = vadd.f32 %v360, %v509
        %v546 = vadd.f32 %v361, %v514
        %v547 = vadd.f32 %v362, %v517
        %v548 = vadd.f32 %v363, %v522
        %v549 = vadd.f32 %v364, %v525
        %v550 = vadd.f32 %v365, %v530
        %v551 = vadd.f32 %v366, %v533
        %552 = vst [vmem:[#allocation3] sm:$0xff] %v536
        %553 = vst [vmem:[#allocation3 + $0x8] sm:$0xff] %v537
        %554 = vst [vmem:[#allocation3 + $0x10] sm:$0xff] %v538
        %555 = vst [vmem:[#allocation3 + $0x18] sm:$0xff] %v539
        %556 = vst [vmem:[#allocation3 + $0x20] sm:$0xff] %v540
        %557 = vst [vmem:[#allocation3 + $0x28] sm:$0xff] %v541
        %558 = vst [vmem:[#allocation3 + $0x30] sm:$0xff] %v542
        %559 = vst [vmem:[#allocation3 + $0x38] sm:$0xff] %v543
        %560 = vst [vmem:[#allocation3 + $0x40] sm:$0xff] %v544
        %561 = vst [vmem:[#allocation3 + $0x48] sm:$0xff] %v545
        %562 = vst [vmem:[#allocation3 + $0x50] sm:$0xff] %v546
        %563 = vst [vmem:[#allocation3 + $0x58] sm:$0xff] %v547
        %564 = vst [vmem:[#allocation3 + $0x60] sm:$0xff] %v548
        %565 = vst [vmem:[#allocation3 + $0x68] sm:$0xff] %v549
        %566 = vst [vmem:[#allocation3 + $0x70] sm:$0xff] %v550
        %567 = vst [vmem:[#allocation3 + $0x78] sm:$0xff] %v551
        // Predicated region
        $region49: #{tpu_custom_call.1} parent=31 // pred_check
          %p568 = pneg %p279
        $region50: #{tpu_custom_call.1} parent=31 // pred_check_branch
          %570 = sbr.rel (%p568) target = $region52
        $region51: #{tpu_custom_call.1} parent=31 // pred_region
          %v571 = vld [vmem:[#allocation3] sm:$0xff]
          %v572 = vld [vmem:[#allocation3 + $0x8] sm:$0xff]
          %v573 = vld [vmem:[#allocation3 + $0x10] sm:$0xff]
          %v574 = vld [vmem:[#allocation3 + $0x18] sm:$0xff]
          %v575 = vld [vmem:[#allocation3 + $0x20] sm:$0xff]
          %v576 = vld [vmem:[#allocation3 + $0x28] sm:$0xff]
          %v577 = vld [vmem:[#allocation3 + $0x30] sm:$0xff]
          %v578 = vld [vmem:[#allocation3 + $0x38] sm:$0xff]
          %v579 = vld [vmem:[#allocation3 + $0x40] sm:$0xff]
          %v580 = vld [vmem:[#allocation3 + $0x48] sm:$0xff]
          %v581 = vld [vmem:[#allocation3 + $0x50] sm:$0xff]
          %v582 = vld [vmem:[#allocation3 + $0x58] sm:$0xff]
          %v583 = vld [vmem:[#allocation3 + $0x60] sm:$0xff]
          %v584 = vld [vmem:[#allocation3 + $0x68] sm:$0xff]
          %v585 = vld [vmem:[#allocation3 + $0x70] sm:$0xff]
          %v586 = vld [vmem:[#allocation3 + $0x78] sm:$0xff]
          %v587 = vld [vmem:[%s275] sm:$0x1]
          %v589 = vlaneseq
          %v590 = vshrl.u32 %v589, 7
          %v591 = vsub.s32 0, %v590
          %v592 = vrot.slane %v587, %v591
          %v594 = vadd.f32 %v571, %v592
          %v595 = vadd.f32 %v572, %v592
          %v596 = vadd.f32 %v573, %v592
          %v597 = vadd.f32 %v574, %v592
          %v598 = vadd.f32 %v575, %v592
          %v599 = vadd.f32 %v576, %v592
          %v600 = vadd.f32 %v577, %v592
          %v601 = vadd.f32 %v578, %v592
          %v602 = vadd.f32 %v579, %v592
          %v603 = vadd.f32 %v580, %v592
          %v604 = vadd.f32 %v581, %v592
          %v605 = vadd.f32 %v582, %v592
          %v606 = vadd.f32 %v583, %v592
          %v607 = vadd.f32 %v584, %v592
          %v608 = vadd.f32 %v585, %v592
          %v609 = vadd.f32 %v586, %v592
          %v610 = vld [vmem:[#allocation2] sm:$0xff]
          %v611 = vld [vmem:[#allocation2 + $0x8] sm:$0xff]
          %v612 = vld [vmem:[#allocation2 + $0x10] sm:$0xff]
          %v613 = vld [vmem:[#allocation2 + $0x18] sm:$0xff]
          %v614 = vld [vmem:[#allocation2 + $0x20] sm:$0xff]
          %v615 = vld [vmem:[#allocation2 + $0x28] sm:$0xff]
          %v616 = vld [vmem:[#allocation2 + $0x30] sm:$0xff]
          %v617 = vld [vmem:[#allocation2 + $0x38] sm:$0xff]
          %v618 = vld [vmem:[#allocation2 + $0x40] sm:$0xff]
          %v619 = vld [vmem:[#allocation2 + $0x48] sm:$0xff]
          %v620 = vld [vmem:[#allocation2 + $0x50] sm:$0xff]
          %v621 = vld [vmem:[#allocation2 + $0x58] sm:$0xff]
          %v622 = vld [vmem:[#allocation2 + $0x60] sm:$0xff]
          %v623 = vld [vmem:[#allocation2 + $0x68] sm:$0xff]
          %v624 = vld [vmem:[#allocation2 + $0x70] sm:$0xff]
          %v625 = vld [vmem:[#allocation2 + $0x78] sm:$0xff]
          %v626 = vxor.u32 %v594, 2147483648
          %v627 = vxor.u32 %v595, 2147483648
          %v628 = vxor.u32 %v596, 2147483648
          %v629 = vxor.u32 %v597, 2147483648
          %v630 = vxor.u32 %v598, 2147483648
          %v631 = vxor.u32 %v599, 2147483648
          %v632 = vxor.u32 %v600, 2147483648
          %v633 = vxor.u32 %v601, 2147483648
          %v634 = vxor.u32 %v602, 2147483648
          %v635 = vxor.u32 %v603, 2147483648
          %v636 = vxor.u32 %v604, 2147483648
          %v637 = vxor.u32 %v605, 2147483648
          %v638 = vxor.u32 %v606, 2147483648
          %v639 = vxor.u32 %v607, 2147483648
          %v640 = vxor.u32 %v608, 2147483648
          %v641 = vxor.u32 %v609, 2147483648
          %v642 = vmul.f32 %v626, 1.442695
          %v643 = vpow.pop %v642
          %v644 = vmul.f32 %v627, 1.442695
          %v645 = vpow.pop %v644
          %v646 = vmul.f32 %v628, 1.442695
          %v647 = vpow.pop %v646
          %v648 = vmul.f32 %v629, 1.442695
          %v649 = vpow.pop %v648
          %v650 = vmul.f32 %v630, 1.442695
          %v651 = vpow.pop %v650
          %v652 = vmul.f32 %v631, 1.442695
          %v653 = vpow.pop %v652
          %v654 = vmul.f32 %v632, 1.442695
          %v655 = vpow.pop %v654
          %v656 = vmul.f32 %v633, 1.442695
          %v657 = vpow.pop %v656
          %v658 = vmul.f32 %v634, 1.442695
          %v659 = vpow.pop %v658
          %v660 = vmul.f32 %v635, 1.442695
          %v661 = vpow.pop %v660
          %v662 = vmul.f32 %v636, 1.442695
          %v663 = vpow.pop %v662
          %v664 = vmul.f32 %v637, 1.442695
          %v665 = vpow.pop %v664
          %v666 = vmul.f32 %v638, 1.442695
          %v667 = vpow.pop %v666
          %v668 = vmul.f32 %v639, 1.442695
          %v669 = vpow.pop %v668
          %v670 = vmul.f32 %v640, 1.442695
          %v671 = vpow.pop %v670
          %v672 = vmul.f32 %v641, 1.442695
          %v673 = vpow.pop %v672
          %v674 = vadd.f32 %v643, 1.0
          %v675 = vadd.f32 %v645, 1.0
          %v676 = vadd.f32 %v647, 1.0
          %v677 = vadd.f32 %v649, 1.0
          %v678 = vadd.f32 %v651, 1.0
          %v679 = vadd.f32 %v653, 1.0
          %v680 = vadd.f32 %v655, 1.0
          %v681 = vadd.f32 %v657, 1.0
          %v682 = vadd.f32 %v659, 1.0
          %v683 = vadd.f32 %v661, 1.0
          %v684 = vadd.f32 %v663, 1.0
          %v685 = vadd.f32 %v665, 1.0
          %v686 = vadd.f32 %v667, 1.0
          %v687 = vadd.f32 %v669, 1.0
          %v688 = vadd.f32 %v671, 1.0
          %v689 = vadd.f32 %v673, 1.0
          %v690 = vrcp.pop %v674
          %v691 = vmul.f32 1.0, %v690
          %v692 = vrcp.pop %v675
          %v693 = vmul.f32 1.0, %v692
          %v694 = vrcp.pop %v676
          %v695 = vmul.f32 1.0, %v694
          %v696 = vrcp.pop %v677
          %v697 = vmul.f32 1.0, %v696
          %v698 = vrcp.pop %v678
          %v699 = vmul.f32 1.0, %v698
          %v700 = vrcp.pop %v679
          %v701 = vmul.f32 1.0, %v700
          %v702 = vrcp.pop %v680
          %v703 = vmul.f32 1.0, %v702
          %v704 = vrcp.pop %v681
          %v705 = vmul.f32 1.0, %v704
          %v706 = vrcp.pop %v682
          %v707 = vmul.f32 1.0, %v706
          %v708 = vrcp.pop %v683
          %v709 = vmul.f32 1.0, %v708
          %v710 = vrcp.pop %v684
          %v711 = vmul.f32 1.0, %v710
          %v712 = vrcp.pop %v685
          %v713 = vmul.f32 1.0, %v712
          %v714 = vrcp.pop %v686
          %v715 = vmul.f32 1.0, %v714
          %v716 = vrcp.pop %v687
          %v717 = vmul.f32 1.0, %v716
          %v718 = vrcp.pop %v688
          %v719 = vmul.f32 1.0, %v718
          %v720 = vrcp.pop %v689
          %v721 = vmul.f32 1.0, %v720
          %v722 = vmul.f32 %v594, %v691
          %v723 = vmul.f32 %v595, %v693
          %v724 = vmul.f32 %v596, %v695
          %v725 = vmul.f32 %v597, %v697
          %v726 = vmul.f32 %v598, %v699
          %v727 = vmul.f32 %v599, %v701
          %v728 = vmul.f32 %v600, %v703
          %v729 = vmul.f32 %v601, %v705
          %v730 = vmul.f32 %v602, %v707
          %v731 = vmul.f32 %v603, %v709
          %v732 = vmul.f32 %v604, %v711
          %v733 = vmul.f32 %v605, %v713
          %v734 = vmul.f32 %v606, %v715
          %v735 = vmul.f32 %v607, %v717
          %v736 = vmul.f32 %v608, %v719
          %v737 = vmul.f32 %v609, %v721
          %v738 = vadd.f32 %v610, %v722
          %v739 = vadd.f32 %v611, %v723
          %v740 = vadd.f32 %v612, %v724
          %v741 = vadd.f32 %v613, %v725
          %v742 = vadd.f32 %v614, %v726
          %v743 = vadd.f32 %v615, %v727
          %v744 = vadd.f32 %v616, %v728
          %v745 = vadd.f32 %v617, %v729
          %v746 = vadd.f32 %v618, %v730
          %v747 = vadd.f32 %v619, %v731
          %v748 = vadd.f32 %v620, %v732
          %v749 = vadd.f32 %v621, %v733
          %v750 = vadd.f32 %v622, %v734
          %v751 = vadd.f32 %v623, %v735
          %v752 = vadd.f32 %v624, %v736
          %v753 = vadd.f32 %v625, %v737
          %754 = vst [vmem:[#allocation2] sm:$0xff] %v738
          %755 = vst [vmem:[#allocation2 + $0x8] sm:$0xff] %v739
          %756 = vst [vmem:[#allocation2 + $0x10] sm:$0xff] %v740
          %757 = vst [vmem:[#allocation2 + $0x18] sm:$0xff] %v741
          %758 = vst [vmem:[#allocation2 + $0x20] sm:$0xff] %v742
          %759 = vst [vmem:[#allocation2 + $0x28] sm:$0xff] %v743
          %760 = vst [vmem:[#allocation2 + $0x30] sm:$0xff] %v744
          %761 = vst [vmem:[#allocation2 + $0x38] sm:$0xff] %v745
          %762 = vst [vmem:[#allocation2 + $0x40] sm:$0xff] %v746
          %763 = vst [vmem:[#allocation2 + $0x48] sm:$0xff] %v747
          %764 = vst [vmem:[#allocation2 + $0x50] sm:$0xff] %v748
          %765 = vst [vmem:[#allocation2 + $0x58] sm:$0xff] %v749
          %766 = vst [vmem:[#allocation2 + $0x60] sm:$0xff] %v750
          %767 = vst [vmem:[#allocation2 + $0x68] sm:$0xff] %v751
          %768 = vst [vmem:[#allocation2 + $0x70] sm:$0xff] %v752
          %769 = vst [vmem:[#allocation2 + $0x78] sm:$0xff] %v753
        $region52: #{tpu_custom_call.1} parent=31 // pred_fallthru
          _
        %p770 = scmp.eq.s32.totalorder %s29, 1
        %p771 = pnand %p279, %p770
        %p772 = pneg %p771
        // Predicated region
        $region53: #{tpu_custom_call.1} parent=31 // pred_check
          _
        $region54: #{tpu_custom_call.1} parent=31 // pred_check_branch
          %774 = sbr.rel (%p771) target = $region56
        $region55: #{tpu_custom_call.1} parent=31 // pred_region
          %v775 = vld [vmem:[#allocation2] sm:$0xff]
          %v776 = vld [vmem:[#allocation2 + $0x8] sm:$0xff]
          %v777 = vld [vmem:[#allocation2 + $0x10] sm:$0xff]
          %v778 = vld [vmem:[#allocation2 + $0x18] sm:$0xff]
          %v779 = vld [vmem:[#allocation2 + $0x20] sm:$0xff]
          %v780 = vld [vmem:[#allocation2 + $0x28] sm:$0xff]
          %v781 = vld [vmem:[#allocation2 + $0x30] sm:$0xff]
          %v782 = vld [vmem:[#allocation2 + $0x38] sm:$0xff]
          %v783 = vld [vmem:[#allocation2 + $0x40] sm:$0xff]
          %v784 = vld [vmem:[#allocation2 + $0x48] sm:$0xff]
          %v785 = vld [vmem:[#allocation2 + $0x50] sm:$0xff]
          %v786 = vld [vmem:[#allocation2 + $0x58] sm:$0xff]
          %v787 = vld [vmem:[#allocation2 + $0x60] sm:$0xff]
          %v788 = vld [vmem:[#allocation2 + $0x68] sm:$0xff]
          %v789 = vld [vmem:[#allocation2 + $0x70] sm:$0xff]
          %v790 = vld [vmem:[#allocation2 + $0x78] sm:$0xff]
          %791 = vst [vmem:[%s267] sm:$0xff] %v775
          %792 = vst [vmem:[%s267 + $0x8] sm:$0xff] %v776
          %793 = vst [vmem:[%s267 + $0x10] sm:$0xff] %v777
          %794 = vst [vmem:[%s267 + $0x18] sm:$0xff] %v778
          %795 = vst [vmem:[%s267 + $0x20] sm:$0xff] %v779
          %796 = vst [vmem:[%s267 + $0x28] sm:$0xff] %v780
          %797 = vst [vmem:[%s267 + $0x30] sm:$0xff] %v781
          %798 = vst [vmem:[%s267 + $0x38] sm:$0xff] %v782
          %799 = vst [vmem:[%s267 + $0x40] sm:$0xff] %v783
          %800 = vst [vmem:[%s267 + $0x48] sm:$0xff] %v784
          %801 = vst [vmem:[%s267 + $0x50] sm:$0xff] %v785
          %802 = vst [vmem:[%s267 + $0x58] sm:$0xff] %v786
          %803 = vst [vmem:[%s267 + $0x60] sm:$0xff] %v787
          %804 = vst [vmem:[%s267 + $0x68] sm:$0xff] %v788
          %805 = vst [vmem:[%s267 + $0x70] sm:$0xff] %v789
          %806 = vst [vmem:[%s267 + $0x78] sm:$0xff] %v790
        $region56: #{tpu_custom_call.1} parent=31 // pred_fallthru
          _
        %s807 = sand.u32 %s141, 1
        %s808 = scalar_lea.sflag [#allocation6], %s807
        %s809 = sand.u32 %s141, 1
        %s810 = smul.addr %s809, 128
        %s811 = scalar_lea.vmem [#allocation9], %s810
        // Predicated region
        $region57: #{tpu_custom_call.1} parent=31 // pred_check
          %p812 = pneg %p151
        $region58: #{tpu_custom_call.1} parent=31 // pred_check_branch
          %814 = sbr.rel (%p812) target = $region60
        $region59: #{tpu_custom_call.1} parent=31 // pred_region
          %s815 = smul.u32 16, %s28
          %s817 = ssub.s32 2048, 2048
          %818 = vsyncadd %s808, %s817
          %s819 = smul.addr %s27, 16
          %s820 = sadd.s32 %s815, %s819
          %s821 = smul.addr %s820, 128
          %s822 = scalar_lea.hbm %s3, %s821
          %s823 = sshll.u32 %s811, 4
          %s824 = int_to_ptr.vmem [resolvable:$true] %s823
          %829 = dma.vmem_to_hbm [thread:$0]  %s824, 2048, %s822, %s808, 128, 128, 8
        $region60: #{tpu_custom_call.1} parent=31 // pred_fallthru
          _
      $region32: #{tpu_custom_call.1} parent=5 // pred_fallthru
        _
      %p830 = scmp.le.s32.totalorder 2, %s16
      // Predicated region
      $region61: #{tpu_custom_call.1} parent=5 // pred_check
        %p831 = pneg %p830
      $region62: #{tpu_custom_call.1} parent=5 // pred_check_branch
        %833 = sbr.rel (%p831) target = $region64
      $region63: #{tpu_custom_call.1} parent=5 // pred_region
        %s834 = ssub.s32 %s16, 2
        // Predicated region
        $region65: #{tpu_custom_call.1} parent=63 // pred_check
          %p835 = pneg %p157
        $region66: #{tpu_custom_call.1} parent=63 // pred_check_branch
          %837 = sbr.rel (%p835) target = $region68
        $region67: #{tpu_custom_call.1} parent=63 // pred_region
          %s838 = sand.u32 %s142, 1
          %s839 = scalar_lea.sflag [#allocation6], %s838
          %s840 = sand.u32 %s142, 1
          %s841 = smul.addr %s840, 128
          %s842 = scalar_lea.vmem [#allocation9], %s841
          %843 = dma.done %s839, 2048
        $region68: #{tpu_custom_call.1} parent=63 // pred_fallthru
          _
      $region64: #{tpu_custom_call.1} parent=5 // pred_fallthru
        _
    $region6: #{tpu_custom_call.1} parent=1 // loop_footer
      %s20 = sadd.s32 1, %s16
    $region7: #{tpu_custom_call.1} parent=1 // loop_footer_branch
      %15 = sbr.rel target = $region3
    $region8: #{tpu_custom_call.1} parent=1 // loop_exit
      _
    %844 = vsyncpa [#allocation5], 1
    %s845 = scalar_lea.sflag [#allocation5], 1
    %846 = vsyncpa %s845, 1
    %847 = vsyncpa [#allocation8], 1
    %s848 = scalar_lea.sflag [#allocation8], 1
    %849 = vsyncpa %s848, 1
    %850 = vsyncpa [#allocation6], 1
    %s851 = scalar_lea.sflag [#allocation6], 1
    %852 = vsyncpa %s851, 1

</llo_original>
